<compile_context>
chip_gen: v7x
topology: tpu7x:2x2x1
jax: 0.10.0
libtpu: 0.0.40
codegen_flags: <defaults>
</compile_context>

<pallas_src>
import functools

import jax
import jax.numpy as jnp
from jax.experimental import pallas as pl
from jax.experimental.pallas import tpu as pltpu

_BN_EPS = 1e-5
_LANE = 128


def _round_up(v, m):
    return ((v + m - 1) // m) * m


def _vmem_capacity_bytes():
    """Physical VMEM per core; conservative (v7x-safe) fallback if query fails."""
    try:
        return int(pltpu.get_tpu_info().vmem_capacity_bytes)
    except Exception:
        return 64 << 20


def _choose_hw_tile(rows, hw, itemsize, budget_bytes):
    """Largest lane-aligned spatial tile whose *real* VMEM footprint fits.

    Per lane of hw_tile the footprint is: 2 double-buffered input buffers in
    the native dtype plus the f32-widened temporary from the in-kernel cast,
    over the sublane-padded row count.
    """
    pack = max(8, 32 // itemsize)                  # sublane packing for dtype
    rows_pad = _round_up(rows, pack)
    bytes_per_lane = rows_pad * (2 * itemsize + 4)
    max_lanes = max(_LANE, budget_bytes // max(1, bytes_per_lane))
    tile = max(_LANE, (max_lanes // _LANE) * _LANE)
    # TODO(synk): if rows_pad is so large that even a 128-lane tile overflows
    # the budget, add a row-tiling grid axis (block (row_tile, hw_tile)) and
    # index the partial-sum outputs by the row tile as well.
    if tile >= hw:
        return hw                                  # single full-extent block
    return tile


def _stream_reduce_kernel(x_ref, sum_ref, sq_ref, *, hw, hw_tile, tiles_per_split):
    # x_ref:   (rows, hw_tile) tile of the (N*C, HW) activations, native dtype
    # sum_ref: (1, rows, 128)  per-split running spatial sums   (f32, lane-bcast)
    # sq_ref:  (1, rows, 128)  per-split running sums of x^2    (f32, lane-bcast)
    p = pl.program_id(0)
    t = pl.program_id(1)

    @pl.when(t == 0)
    def _init():
        sum_ref[...] = jnp.zeros_like(sum_ref)
        sq_ref[...] = jnp.zeros_like(sq_ref)

    # Number of valid lanes in this tile (may be < hw_tile for the tail tile,
    # and <= 0 for a phantom tile of an uneven split -> contributes nothing).
    num_valid = hw - (p * tiles_per_split + t) * hw_tile

    # TODO(synk): for sub-32-bit dtypes on v7x, offload these lane reductions
    # to the idle MXU (x @ ones) so the VALU slot does not become binding.
    @pl.when(num_valid >= hw_tile)
    def _full_tile():
        xf = x_ref[...].astype(jnp.float32)
        sum_ref[...] += jnp.sum(xf, axis=1, keepdims=True)      # bcast over lanes
        sq_ref[...] += jnp.sum(xf * xf, axis=1, keepdims=True)

    @pl.when(num_valid < hw_tile)
    def _tail_tile():
        lane = jax.lax.broadcasted_iota(jnp.int32, (1, hw_tile), 1)
        mask = lane < num_valid
        xf = jnp.where(mask, x_ref[...].astype(jnp.float32), jnp.float32(0.0))
        sum_ref[...] += jnp.sum(xf, axis=1, keepdims=True)
        sq_ref[...] += jnp.sum(xf * xf, axis=1, keepdims=True)


def _finalize_kernel(s_ref, ss_ref, gamma_ref, beta_ref, w_ref, b_ref, o_ref, *,
                     hw_true, n_batch):
    # s_ref/ss_ref: (N, C) spatial sums / sums of squares (combined over splits)
    # gamma_ref/beta_ref: (1, C); w_ref: (C, O); b_ref: (1, O); o_ref: (N, O)
    s_nc = s_ref[...]
    ss_nc = ss_ref[...]

    # --- BatchNorm2d batch statistics over (N, H, W), biased variance ---
    count = jnp.float32(n_batch * hw_true)
    mu_c = jnp.sum(s_nc, axis=0, keepdims=True) / count           # (1, C)
    ex2_c = jnp.sum(ss_nc, axis=0, keepdims=True) / count         # (1, C)
    # TODO(synk): for very large N*HW use mean-shifted per-tile partials
    # (Welford combine) to avoid cancellation in E[x^2] - E[x]^2.
    var_c = ex2_c - mu_c * mu_c
    inv_std = jax.lax.rsqrt(var_c + _BN_EPS)                      # (1, C)

    # --- fused BN + AdaptiveAvgPool2d((1,1)) ---
    pooled = (s_nc / jnp.float32(hw_true) - mu_c) * inv_std * gamma_ref[...] \
        + beta_ref[...]                                           # (N, C)

    # --- conv1x1 on a 1x1 map == matmul over channels + bias, then Sigmoid ---
    y = jnp.dot(pooled, w_ref[...], preferred_element_type=jnp.float32)
    y = y + b_ref[...]
    o_ref[...] = jax.nn.sigmoid(y).astype(o_ref.dtype)


def sse_block_forward(x_nchw, gamma, beta, conv_w, conv_b, *,
                      hw_tile=None, num_splits=None):
    """x_nchw: (N, C, H, W); conv_w: (O, C, 1, 1); conv_b: (O,). Returns (N, O, 1, 1)."""
    n, c, h, w = x_nchw.shape
    o = conv_w.shape[0]
    hw = h * w
    rows = n * c

    # Free, contiguous reshape: channels/batch fill the sublane dimension.
    x2 = x_nchw.reshape(rows, hw)
    itemsize = x2.dtype.itemsize

    # VMEM budget keyed off the actual part (128 MiB on v5e/v6e, 64 MiB on v7x).
    vmem_cap = _vmem_capacity_bytes()
    vmem_limit = max(32 << 20, min(int(vmem_cap * 3 // 4), 112 << 20))
    tile_budget = vmem_limit - (4 << 20)

    if hw_tile is None:
        hw_tile = _choose_hw_tile(rows, hw, itemsize, tile_budget)
    else:
        hw_tile = max(_LANE, _round_up(hw_tile, _LANE))
    if hw_tile >= hw:
        hw_tile = hw                               # single full-extent block

    total_tiles = pl.cdiv(hw, hw_tile)
    if num_splits is None:
        # 2-way split feeds both TensorCores on v7x; a harmless serial loop on
        # single-TC chips (v5e/v6e).
        num_splits = 2 if total_tiles >= 2 else 1
    num_splits = max(1, min(num_splits, total_tiles))
    tiles_per_split = pl.cdiv(total_tiles, num_splits)

    if num_splits * tiles_per_split == total_tiles:
        x_index = lambda p, t: (0, p * tiles_per_split + t)
    else:
        # Uneven split: clamp phantom tiles onto the last real block (their
        # contribution is masked to zero in-kernel via num_valid <= 0).
        last = total_tiles - 1
        x_index = lambda p, t: (0, jnp.minimum(p * tiles_per_split + t, last))

    stream = functools.partial(_stream_reduce_kernel, hw=hw, hw_tile=hw_tile,
                               tiles_per_split=tiles_per_split)
    cost = pl.CostEstimate(
        flops=3 * rows * hw,
        transcendentals=0,
        bytes_accessed=rows * hw * itemsize + 2 * num_splits * rows * _LANE * 4,
    )

    # TODO(synk): for very small hw_tile with exposed DMA, bump the x spec to
    # pipeline_mode=pl.Buffered(3) where VMEM headroom allows.
    sums3, sqs3 = pl.pallas_call(
        stream,
        out_shape=(
            jax.ShapeDtypeStruct((num_splits, rows, _LANE), jnp.float32),
            jax.ShapeDtypeStruct((num_splits, rows, _LANE), jnp.float32),
        ),
        grid_spec=pltpu.PrefetchScalarGridSpec(
            num_scalar_prefetch=0,
            grid=(num_splits, tiles_per_split),
            in_specs=[pl.BlockSpec((rows, hw_tile), x_index)],
            out_specs=[
                pl.BlockSpec((1, rows, _LANE), lambda p, t: (p, 0, 0)),
                pl.BlockSpec((1, rows, _LANE), lambda p, t: (p, 0, 0)),
            ],
        ),
        compiler_params=pltpu.CompilerParams(
            dimension_semantics=("parallel", "arbitrary"),
            vmem_limit_bytes=vmem_limit,
        ),
        cost_estimate=cost,
    )(x2)

    # Combine the per-split partials (a few dozen floats) and reshape to (N, C).
    s_nc = sums3[:, :, 0].sum(axis=0).reshape(n, c)
    ss_nc = sqs3[:, :, 0].sum(axis=0).reshape(n, c)

    gamma2 = gamma.reshape(1, c).astype(jnp.float32)
    beta2 = beta.reshape(1, c).astype(jnp.float32)
    w_t = conv_w.reshape(o, c).T.astype(jnp.float32)          # (C, O)
    b2 = conv_b.reshape(1, o).astype(jnp.float32)

    out = pl.pallas_call(
        functools.partial(_finalize_kernel, hw_true=hw, n_batch=n),
        out_shape=jax.ShapeDtypeStruct((n, o), jnp.float32),
        in_specs=[pl.BlockSpec(memory_space=pltpu.MemorySpace.VMEM)] * 6,
        out_specs=pl.BlockSpec(memory_space=pltpu.MemorySpace.VMEM),
    )(s_nc, ss_nc, gamma2, beta2, w_t, b2)

    return out.reshape(n, o, 1, 1)


def _reference(x_nchw, gamma, beta, conv_w, conv_b):
    """Pure-JAX reference matching PyTorch training-mode SSEBlock forward."""
    x = x_nchw.astype(jnp.float32)
    mean = jnp.mean(x, axis=(0, 2, 3), keepdims=True)
    var = jnp.mean((x - mean) ** 2, axis=(0, 2, 3), keepdims=True)
    x_bn = (x - mean) / jnp.sqrt(var + _BN_EPS)
    x_bn = x_bn * gamma.reshape(1, -1, 1, 1) + beta.reshape(1, -1, 1, 1)
    pooled = jnp.mean(x_bn, axis=(2, 3))                      # (N, C)
    y = pooled @ conv_w.reshape(conv_w.shape[0], -1).T + conv_b[None, :]
    y = jax.nn.sigmoid(y)
    return y.reshape(y.shape[0], y.shape[1], 1, 1)


if __name__ == "__main__":
    feature_dim, output_dim = 4, 8

    key = jax.random.PRNGKey(0)
    kx1, kx2, kg, kb, kw, kbias = jax.random.split(key, 6)

    # Deterministic parameter init (synthetic; not a checkpoint load).
    gamma = 1.0 + 0.1 * jax.random.normal(kg, (feature_dim,), dtype=jnp.float32)
    beta = 0.1 * jax.random.normal(kb, (feature_dim,), dtype=jnp.float32)
    conv_w = 0.5 * jax.random.normal(kw, (output_dim, feature_dim, 1, 1), dtype=jnp.float32)
    conv_b = 0.1 * jax.random.normal(kbias, (output_dim,), dtype=jnp.float32)

    # Case 1: 16x16 spatial, forced hw_tile=128 -> two full tiles, 2-way
    # parallel split (streaming/pipelined path exercised).
    x1 = jax.random.normal(kx1, (2, feature_dim, 16, 16), dtype=jnp.float32)
    out1 = jax.block_until_ready(
        sse_block_forward(x1, gamma, beta, conv_w, conv_b, hw_tile=128))
    ref1 = jax.block_until_ready(_reference(x1, gamma, beta, conv_w, conv_b))
    assert out1.shape == (2, output_dim, 1, 1), out1.shape
    assert jnp.allclose(out1, ref1, atol=1e-5, rtol=1e-5), \
        float(jnp.max(jnp.abs(out1 - ref1)))

    # Case 2: 15x15 spatial (HW=225, not a multiple of 128) with forced
    # 128-lane tiles -> exercises the masked tail tile (no host-side pad).
    x2 = jax.random.normal(kx2, (2, feature_dim, 15, 15), dtype=jnp.float32)
    out2 = jax.block_until_ready(
        sse_block_forward(x2, gamma, beta, conv_w, conv_b, hw_tile=128))
    ref2 = jax.block_until_ready(_reference(x2, gamma, beta, conv_w, conv_b))
    assert jnp.allclose(out2, ref2, atol=1e-5, rtol=1e-5), \
        float(jnp.max(jnp.abs(out2 - ref2)))

    # Case 3: automatic tile selection (single full-extent block).
    out3 = jax.block_until_ready(
        sse_block_forward(x2, gamma, beta, conv_w, conv_b))
    assert jnp.allclose(out3, ref2, atol=1e-5, rtol=1e-5), \
        float(jnp.max(jnp.abs(out3 - ref2)))

    print("KERNEL_OK")
</pallas_src>

<mosaic_0001>
module attributes {stable_mosaic.version = 11 : i64} {
  func.func @_stream_reduce_kernel(%arg0: i32, %arg1: i32, %arg2: memref<8x128xf32, #tpu.memory_space<vmem>>, %arg3: memref<1x8x128xf32, #tpu.memory_space<vmem>>, %arg4: memref<1x8x128xf32, #tpu.memory_space<vmem>>) attributes {dimension_semantics = [#tpu.dimension_semantics<parallel>, #tpu.dimension_semantics<arbitrary>], iteration_bounds = array<i64: 2, 1>, scalar_prefetch = 0 : i64, scratch_operands = 0 : i64, tpu.core_type = #tpu.core_type<tc>, window_params = [{transform_indices = @transform_0, window_bounds = array<i64: 8, 128>}, {transform_indices = @transform_1, window_bounds = array<i64: 1, 8, 128>}, {transform_indices = @transform_2, window_bounds = array<i64: 1, 8, 128>}]} {
    %c0_i32 = arith.constant 0 : i32
    %0 = arith.cmpi eq, %arg1, %c0_i32 : i32
    %1 = arith.extui %0 : i1 to i32
    %c0_i32_0 = arith.constant 0 : i32
    %2 = arith.cmpi ne, %1, %c0_i32_0 : i32
    scf.if %2 {
      %cst = arith.constant 0.000000e+00 : f32
      %13 = vector.broadcast %cst : f32 to vector<1x8x128xf32>
      %c0 = arith.constant 0 : index
      %c0_5 = arith.constant 0 : index
      %c0_6 = arith.constant 0 : index
      %14 = vector.load %arg3[%c0, %c0_5, %c0_6] : memref<1x8x128xf32, #tpu.memory_space<vmem>>, vector<1x8x128xf32>
      tpu.vector_store %arg3[%c0, %c0_5, %c0_6], %13 {strides = array<i32>} : memref<1x8x128xf32, #tpu.memory_space<vmem>>, vector<1x8x128xf32>,
      %cst_7 = arith.constant 0.000000e+00 : f32
      %15 = vector.broadcast %cst_7 : f32 to vector<1x8x128xf32>
      %c0_8 = arith.constant 0 : index
      %c0_9 = arith.constant 0 : index
      %c0_10 = arith.constant 0 : index
      %16 = vector.load %arg4[%c0_8, %c0_9, %c0_10] : memref<1x8x128xf32, #tpu.memory_space<vmem>>, vector<1x8x128xf32>
      tpu.vector_store %arg4[%c0_8, %c0_9, %c0_10], %15 {strides = array<i32>} : memref<1x8x128xf32, #tpu.memory_space<vmem>>, vector<1x8x128xf32>,
    } else {
    }
    %c1_i32 = arith.constant 1 : i32
    %3 = arith.muli %arg0, %c1_i32 : i32
    %4 = arith.addi %3, %arg1 : i32
    %c128_i32 = arith.constant 128 : i32
    %5 = arith.muli %4, %c128_i32 : i32
    %c256_i32 = arith.constant 256 : i32
    %6 = arith.subi %c256_i32, %5 : i32
    %c128_i32_1 = arith.constant 128 : i32
    %7 = arith.cmpi sge, %6, %c128_i32_1 : i32
    %8 = arith.extui %7 : i1 to i32
    %c0_i32_2 = arith.constant 0 : i32
    %9 = arith.cmpi ne, %8, %c0_i32_2 : i32
    scf.if %9 {
      %c0 = arith.constant 0 : index
      %c0_5 = arith.constant 0 : index
      %13 = vector.load %arg2[%c0, %c0_5] : memref<8x128xf32, #tpu.memory_space<vmem>>, vector<8x128xf32>
      %c0_6 = arith.constant 0 : index
      %c0_7 = arith.constant 0 : index
      %c0_8 = arith.constant 0 : index
      %14 = vector.load %arg3[%c0_6, %c0_7, %c0_8] : memref<1x8x128xf32, #tpu.memory_space<vmem>>, vector<1x8x128xf32>
      %cst = arith.constant dense<0.000000e+00> : vector<8xf32>
      %15 = vector.multi_reduction <add>, %13, %cst [1] : vector<8x128xf32> to vector<8xf32>
      %16 = vector.shape_cast %15 : vector<8xf32> to vector<8x1xf32>
      %17 = vector.shape_cast %16 : vector<8x1xf32> to vector<1x8x1xf32>
      %18 = vector.broadcast %17 : vector<1x8x1xf32> to vector<1x8x128xf32>
      %19 = arith.addf %14, %18 : vector<1x8x128xf32>
      %c0_9 = arith.constant 0 : index
      %c0_10 = arith.constant 0 : index
      %c0_11 = arith.constant 0 : index
      %20 = vector.load %arg3[%c0_9, %c0_10, %c0_11] : memref<1x8x128xf32, #tpu.memory_space<vmem>>, vector<1x8x128xf32>
      tpu.vector_store %arg3[%c0_9, %c0_10, %c0_11], %19 {strides = array<i32>} : memref<1x8x128xf32, #tpu.memory_space<vmem>>, vector<1x8x128xf32>,
      %c0_12 = arith.constant 0 : index
      %c0_13 = arith.constant 0 : index
      %c0_14 = arith.constant 0 : index
      %21 = vector.load %arg4[%c0_12, %c0_13, %c0_14] : memref<1x8x128xf32, #tpu.memory_space<vmem>>, vector<1x8x128xf32>
      %22 = arith.mulf %13, %13 : vector<8x128xf32>
      %cst_15 = arith.constant dense<0.000000e+00> : vector<8xf32>
      %23 = vector.multi_reduction <add>, %22, %cst_15 [1] : vector<8x128xf32> to vector<8xf32>
      %24 = vector.shape_cast %23 : vector<8xf32> to vector<8x1xf32>
      %25 = vector.shape_cast %24 : vector<8x1xf32> to vector<1x8x1xf32>
      %26 = vector.broadcast %25 : vector<1x8x1xf32> to vector<1x8x128xf32>
      %27 = arith.addf %21, %26 : vector<1x8x128xf32>
      %c0_16 = arith.constant 0 : index
      %c0_17 = arith.constant 0 : index
      %c0_18 = arith.constant 0 : index
      %28 = vector.load %arg4[%c0_16, %c0_17, %c0_18] : memref<1x8x128xf32, #tpu.memory_space<vmem>>, vector<1x8x128xf32>
      tpu.vector_store %arg4[%c0_16, %c0_17, %c0_18], %27 {strides = array<i32>} : memref<1x8x128xf32, #tpu.memory_space<vmem>>, vector<1x8x128xf32>,
    } else {
    }
    %c128_i32_3 = arith.constant 128 : i32
    %10 = arith.cmpi slt, %6, %c128_i32_3 : i32
    %11 = arith.extui %10 : i1 to i32
    %c0_i32_4 = arith.constant 0 : i32
    %12 = arith.cmpi ne, %11, %c0_i32_4 : i32
    scf.if %12 {
      %13 = tpu.iota {dimensions = array<i32: 1>} : vector<1x128xi32>
      %14 = vector.broadcast %6 : i32 to vector<1x128xi32>
      %15 = arith.cmpi slt, %13, %14 : vector<1x128xi32>
      %c0 = arith.constant 0 : index
      %c0_5 = arith.constant 0 : index
      %16 = vector.load %arg2[%c0, %c0_5] : memref<8x128xf32, #tpu.memory_space<vmem>>, vector<8x128xf32>
      %cst = arith.constant 0.000000e+00 : f32
      %17 = vector.shape_cast %15 : vector<1x128xi1> to vector<1x128xi1>
      %18 = vector.broadcast %17 : vector<1x128xi1> to vector<8x128xi1>
      %19 = vector.broadcast %cst : f32 to vector<8x128xf32>
      %20 = arith.select %18, %16, %19 : vector<8x128xi1>, vector<8x128xf32>
      %c0_6 = arith.constant 0 : index
      %c0_7 = arith.constant 0 : index
      %c0_8 = arith.constant 0 : index
      %21 = vector.load %arg3[%c0_6, %c0_7, %c0_8] : memref<1x8x128xf32, #tpu.memory_space<vmem>>, vector<1x8x128xf32>
      %cst_9 = arith.constant dense<0.000000e+00> : vector<8xf32>
      %22 = vector.multi_reduction <add>, %20, %cst_9 [1] : vector<8x128xf32> to vector<8xf32>
      %23 = vector.shape_cast %22 : vector<8xf32> to vector<8x1xf32>
      %24 = vector.shape_cast %23 : vector<8x1xf32> to vector<1x8x1xf32>
      %25 = vector.broadcast %24 : vector<1x8x1xf32> to vector<1x8x128xf32>
      %26 = arith.addf %21, %25 : vector<1x8x128xf32>
      %c0_10 = arith.constant 0 : index
      %c0_11 = arith.constant 0 : index
      %c0_12 = arith.constant 0 : index
      %27 = vector.load %arg3[%c0_10, %c0_11, %c0_12] : memref<1x8x128xf32, #tpu.memory_space<vmem>>, vector<1x8x128xf32>
      tpu.vector_store %arg3[%c0_10, %c0_11, %c0_12], %26 {strides = array<i32>} : memref<1x8x128xf32, #tpu.memory_space<vmem>>, vector<1x8x128xf32>,
      %c0_13 = arith.constant 0 : index
      %c0_14 = arith.constant 0 : index
      %c0_15 = arith.constant 0 : index
      %28 = vector.load %arg4[%c0_13, %c0_14, %c0_15] : memref<1x8x128xf32, #tpu.memory_space<vmem>>, vector<1x8x128xf32>
      %29 = arith.mulf %20, %20 : vector<8x128xf32>
      %cst_16 = arith.constant dense<0.000000e+00> : vector<8xf32>
      %30 = vector.multi_reduction <add>, %29, %cst_16 [1] : vector<8x128xf32> to vector<8xf32>
      %31 = vector.shape_cast %30 : vector<8xf32> to vector<8x1xf32>
      %32 = vector.shape_cast %31 : vector<8x1xf32> to vector<1x8x1xf32>
      %33 = vector.broadcast %32 : vector<1x8x1xf32> to vector<1x8x128xf32>
      %34 = arith.addf %28, %33 : vector<1x8x128xf32>
      %c0_17 = arith.constant 0 : index
      %c0_18 = arith.constant 0 : index
      %c0_19 = arith.constant 0 : index
      %35 = vector.load %arg4[%c0_17, %c0_18, %c0_19] : memref<1x8x128xf32, #tpu.memory_space<vmem>>, vector<1x8x128xf32>
      tpu.vector_store %arg4[%c0_17, %c0_18, %c0_19], %34 {strides = array<i32>} : memref<1x8x128xf32, #tpu.memory_space<vmem>>, vector<1x8x128xf32>,
    } else {
    }
    return
  }
  func.func @transform_0(%arg0: i32, %arg1: i32) -> (i32, i32) {
    %c1_i32 = arith.constant 1 : i32
    %0 = arith.muli %arg0, %c1_i32 : i32
    %1 = arith.addi %0, %arg1 : i32
    %c0_i32 = arith.constant 0 : i32
    %c0_i32_0 = arith.constant 0 : i32
    return %c0_i32, %1 : i32, i32
  }
  func.func @transform_1(%arg0: i32, %arg1: i32) -> (i32, i32, i32) {
    %c0_i32 = arith.constant 0 : i32
    %c0_i32_0 = arith.constant 0 : i32
    %c0_i32_1 = arith.constant 0 : i32
    return %arg0, %c0_i32, %c0_i32_0 : i32, i32, i32
  }
  func.func @transform_2(%arg0: i32, %arg1: i32) -> (i32, i32, i32) {
    %c0_i32 = arith.constant 0 : i32
    %c0_i32_0 = arith.constant 0 : i32
    %c0_i32_1 = arith.constant 0 : i32
    return %arg0, %c0_i32, %c0_i32_0 : i32, i32, i32
  }
}

</mosaic_0001>

<llo_original>
// kernel: tpu_custom_call.1
$region0: #{tpu_custom_call.1}
  #allocation0 [shape = 'u32[]', space=smem, size = 0x4, offset = 0x4, fixed_abs, tag = 'smem constant byte address 0x4 - core index']
  #allocation1 [shape = 'u32[144,128]{1,0:T(1,128)}', space=vmem, size = 0x12000, scoped, tag = 'internal scratch']
  %s0 = inlined_call_operand.hbm [shape: f32[8,256], index: 0, kind: input, shape index: {}]
  %s1 = inlined_call_operand.hbm [shape: f32[2,8,128], index: 1, kind: output, shape index: {0}]
  %s2 = inlined_call_operand.hbm [shape: f32[2,8,128], index: 2, kind: output, shape index: {1}]
  %3 = xla_tuple %s1, %s2
  %s4 = sld [smem:[#allocation0]]
  $region61: #{tpu_custom_call.1} parent=0
    _
  %s6 = ssub.s32 1, %s4
  %s7 = scalar_select 0, %s6, %s4
  $region1: #{tpu_custom_call.1} parent=0
    #allocation2 [shape = 'u8[8192]{0}', space=vmem, size = 0x2000, scoped, tag = 'input window, operand 0']
    #allocation3 [shape = 's32[2]{0}', space=sflag, size = 0x8, scoped, tag = 'scoped memory for tpu_custom_call.1']
    #allocation4 [shape = 's32[2]{0}', space=sflag, size = 0x8, scoped, tag = 'scoped memory for tpu_custom_call.1']
    #allocation5 [shape = 'u8[8192]{0}', space=vmem, size = 0x2000, scoped, tag = 'output window, operand 0']
    #allocation6 [shape = 'u8[8192]{0}', space=vmem, size = 0x2000, scoped, tag = 'output window, operand 1']
    #allocation7 [shape = 's32[2]{0}', space=sflag, size = 0x8, scoped, tag = 'scoped memory for tpu_custom_call.1']
    %8 = vsyncpa [#allocation3], 0
    %s9 = scalar_lea.sflag [#allocation3], 1
    %10 = vsyncpa %s9, 0
    %11 = vsyncpa [#allocation4], 0
    %s12 = scalar_lea.sflag [#allocation4], 1
    %13 = vsyncpa %s12, 0
    %14 = vsyncpa [#allocation7], 0
    %s15 = scalar_lea.sflag [#allocation7], 1
    %16 = vsyncpa %s15, 0
    loop: start=0, step=1, limit=4
    $region2: #{tpu_custom_call.1} parent=1 // loop_pre_header
      _
    $region3: #{tpu_custom_call.1} parent=1 // loop_header
      %s18 = sphi 0, %s22
      %p19 = scmp.ge.s32.totalorder %s18, 4
      %s25 = sphi 0, %s37
      %s26 = sphi 0, %s33
      %s27 = sphi 0, %s25
      %s28 = sphi 0, %s26
      %s29 = sphi 0, %s27
      %s30 = sphi 0, %s28
      %s42 = sphi 0, %s44
      %s45 = sphi 0, %s42
      %s46 = sphi 0, %s45
      %s62 = sphi 0, %s46
      %s68 = sphi 0, %s70
      %s71 = sphi 0, %s68
      %s72 = sphi 0, %s71
      %s88 = sphi 0, %s72
      %s94 = sphi 0, %s96
      %s97 = sphi 0, %s94
      %s98 = sphi 0, %s97
      %s114 = sphi 0, %s98
    $region4: #{tpu_custom_call.1} parent=1 // loop_header_branch
      %21 = sbr.rel (%p19) target = $region8
    $region5: #{tpu_custom_call.1} parent=1 // loop_body
      %s23 = ssub.s32 %s18, 1
      %s24 = ssub.s32 %s18, 2
      %s31 = sadd.s32 1, %s26
      %p32 = scmp.ge.s32.totalorder %s31, 1
      %s33 = scalar_select %p32, 0, %s31
      %s34 = sadd.s32 1, %s25
      %s35 = scalar_select %p32, %s34, %s25
      %p36 = scmp.ge.s32.totalorder %s35, 2
      %s37 = scalar_select %p36, 0, %s35
      %s38 = sadd.s32 %s25, %s26
      %s39 = sadd.s32 %s37, %s33
      %s40 = ssub.s32 %s38, %s39
      %p41 = scmp.eq.s32.totalorder %s40, 0
      %s43 = sadd.s32 %s42, 1
      %s44 = scalar_select %p41, %s42, %s43
      %p47 = pneg %p41
      %p48 = scmp.eq.s32.totalorder %s18, 1
      %p49 = por %p47, %p48
      %p50 = scmp.ne.s32.totalorder %s42, %s45
      %p51 = scmp.eq.s32.totalorder %s18, 0
      %p52 = por %p50, %p51
      %p53 = scmp.ne.s32.totalorder %s42, %s45
      %p54 = scmp.eq.s32.totalorder %s23, 1
      %p55 = por %p53, %p54
      %p56 = scmp.ne.s32.totalorder %s45, %s46
      %p57 = scmp.eq.s32.totalorder %s23, 0
      %p58 = por %p56, %p57
      %p59 = scmp.ne.s32.totalorder %s45, %s46
      %p60 = scmp.eq.s32.totalorder %s24, 1
      %p61 = por %p59, %p60
      %p63 = scmp.ne.s32.totalorder %s46, %s62
      %p64 = scmp.eq.s32.totalorder %s24, 0
      %p65 = por %p63, %p64
      %s66 = ssub.s32 %s25, %s37
      %p67 = scmp.eq.s32.totalorder %s66, 0
      %s69 = sadd.s32 %s68, 1
      %s70 = scalar_select %p67, %s68, %s69
      %p73 = pneg %p67
      %p74 = scmp.eq.s32.totalorder %s18, 1
      %p75 = por %p73, %p74
      %p76 = scmp.ne.s32.totalorder %s68, %s71
      %p77 = scmp.eq.s32.totalorder %s18, 0
      %p78 = por %p76, %p77
      %p79 = scmp.ne.s32.totalorder %s68, %s71
      %p80 = scmp.eq.s32.totalorder %s23, 1
      %p81 = por %p79, %p80
      %p82 = scmp.ne.s32.totalorder %s71, %s72
      %p83 = scmp.eq.s32.totalorder %s23, 0
      %p84 = por %p82, %p83
      %p85 = scmp.ne.s32.totalorder %s71, %s72
      %p86 = scmp.eq.s32.totalorder %s24, 1
      %p87 = por %p85, %p86
      %p89 = scmp.ne.s32.totalorder %s72, %s88
      %p90 = scmp.eq.s32.totalorder %s24, 0
      %p91 = por %p89, %p90
      %s92 = ssub.s32 %s25, %s37
      %p93 = scmp.eq.s32.totalorder %s92, 0
      %s95 = sadd.s32 %s94, 1
      %s96 = scalar_select %p93, %s94, %s95
      %p99 = pneg %p93
      %p100 = scmp.eq.s32.totalorder %s18, 1
      %p101 = por %p99, %p100
      %p102 = scmp.ne.s32.totalorder %s94, %s97
      %p103 = scmp.eq.s32.totalorder %s18, 0
      %p104 = por %p102, %p103
      %p105 = scmp.ne.s32.totalorder %s94, %s97
      %p106 = scmp.eq.s32.totalorder %s23, 1
      %p107 = por %p105, %p106
      %p108 = scmp.ne.s32.totalorder %s97, %s98
      %p109 = scmp.eq.s32.totalorder %s23, 0
      %p110 = por %p108, %p109
      %p111 = scmp.ne.s32.totalorder %s97, %s98
      %p112 = scmp.eq.s32.totalorder %s24, 1
      %p113 = por %p111, %p112
      %p115 = scmp.ne.s32.totalorder %s98, %s114
      %p116 = scmp.eq.s32.totalorder %s24, 0
      %p117 = por %p115, %p116
      %p118 = scmp.le.s32.totalorder 1, %s18
      %p119 = scmp.lt.s32.totalorder %s18, 3
      %p120 = pnand %p118, %p119
      %p121 = pneg %p120
      // Predicated region
      $region9: #{tpu_custom_call.1} parent=5 // pred_check
        _
      $region10: #{tpu_custom_call.1} parent=5 // pred_check_branch
        %123 = sbr.rel (%p120) target = $region12
      $region11: #{tpu_custom_call.1} parent=5 // pred_region
        %s124 = ssub.s32 %s18, 1
      $region12: #{tpu_custom_call.1} parent=5 // pred_fallthru
        _
      %p125 = scmp.lt.s32.totalorder %s18, 2
      // Predicated region
      $region13: #{tpu_custom_call.1} parent=5 // pred_check
        %p126 = pneg %p125
      $region14: #{tpu_custom_call.1} parent=5 // pred_check_branch
        %128 = sbr.rel (%p126) target = $region16
      $region15: #{tpu_custom_call.1} parent=5 // pred_region
        // Predicated region
        $region17: #{tpu_custom_call.1} parent=15 // pred_check
          %p129 = pneg %p52
        $region18: #{tpu_custom_call.1} parent=15 // pred_check_branch
          %131 = sbr.rel (%p129) target = $region20
        $region19: #{tpu_custom_call.1} parent=15 // pred_region
          %s132 = sand.u32 %s42, 1
          %s133 = scalar_lea.sflag [#allocation3], %s132
          %s134 = sand.u32 %s42, 1
          %s135 = smul.addr %s134, 8
          %s136 = scalar_lea.vmem [#allocation2], %s135
          %s137 = sadd.s32 %s25, %s26
          %s139 = ssub.s32 128, 128
          %140 = vsyncadd %s133, %s139
          %s141 = smul.addr %s137, 128
          %s142 = scalar_lea.hbm %s0, %s141
          %s144 = sshll.u32 %s136, 4
          %s145 = int_to_ptr.vmem [resolvable:$true] %s144
          %147 = dma.hbm_to_vmem [thread:$0]  %s142, 128, %s145, %s133
        $region20: #{tpu_custom_call.1} parent=15 // pred_fallthru
          _
      $region16: #{tpu_custom_call.1} parent=5 // pred_fallthru
        _
      %p148 = scmp.le.s32.totalorder 1, %s18
      %p149 = scmp.lt.s32.totalorder %s18, 3
      %p150 = pnand %p148, %p149
      %p151 = pneg %p150
      // Predicated region
      $region21: #{tpu_custom_call.1} parent=5 // pred_check
        _
      $region22: #{tpu_custom_call.1} parent=5 // pred_check_branch
        %153 = sbr.rel (%p150) target = $region24
      $region23: #{tpu_custom_call.1} parent=5 // pred_region
        %s154 = ssub.s32 %s18, 1
        %s155 = sand.u32 %s45, 1
        %s156 = scalar_lea.sflag [#allocation3], %s155
        %s157 = sand.u32 %s45, 1
        %s158 = smul.addr %s157, 8
        %s159 = scalar_lea.vmem [#allocation2], %s158
        // Predicated region
        $region25: #{tpu_custom_call.1} parent=23 // pred_check
          %p160 = pneg %p58
        $region26: #{tpu_custom_call.1} parent=23 // pred_check_branch
          %162 = sbr.rel (%p160) target = $region28
        $region27: #{tpu_custom_call.1} parent=23 // pred_region
          %163 = dma.done %s156, 128
        $region28: #{tpu_custom_call.1} parent=23 // pred_fallthru
          _
        %s164 = sand.u32 %s45, 1
        %s165 = scalar_lea.sflag [#allocation3], %s164
        %s166 = sand.u32 %s45, 1
        %s167 = smul.addr %s166, 8
        %s168 = scalar_lea.vmem [#allocation2], %s167
        %p169 = pneg %p58
        %p170 = pneg %p55
        %p171 = pneg %p84
        %p172 = pneg %p81
        %s173 = sand.u32 %s71, 1
        %s174 = scalar_lea.sflag [#allocation4], %s173
        %s175 = sand.u32 %s71, 1
        %s176 = smul.addr %s175, 8
        %s177 = scalar_lea.vmem [#allocation5], %s176
        %p178 = pneg %p110
        %p179 = pneg %p107
        %s180 = sand.u32 %s97, 1
        %s181 = scalar_lea.sflag [#allocation7], %s180
        %s182 = sand.u32 %s97, 1
        %s183 = smul.addr %s182, 8
        %s184 = scalar_lea.vmem [#allocation6], %s183
        %s185 = sadd.s32 %s27, %s28
        %p186 = scmp.eq.s32.totalorder %s28, 0
        // Predicated region
        $region29: #{tpu_custom_call.1} parent=23 // pred_check
          %p187 = pneg %p186
        $region30: #{tpu_custom_call.1} parent=23 // pred_check_branch
          %189 = sbr.rel (%p187) target = $region32
        $region31: #{tpu_custom_call.1} parent=23 // pred_region
          %190 = vst [vmem:[%s177] sm:$0xff] 0.0
          %191 = vst [vmem:[%s184] sm:$0xff] 0.0
        $region32: #{tpu_custom_call.1} parent=23 // pred_fallthru
          _
        %s192 = sadd.s32 %s27, %s28
        %s193 = smul.u32 %s192, 128
        %s194 = ssub.s32 256, %s193
        %p195 = scmp.ge.s32.totalorder %s194, 128
        // Predicated region
        $region33: #{tpu_custom_call.1} parent=23 // pred_check
          %p196 = pneg %p195
        $region34: #{tpu_custom_call.1} parent=23 // pred_check_branch
          %198 = sbr.rel (%p196) target = $region36
        $region35: #{tpu_custom_call.1} parent=23 // pred_region
          %v199 = vld [vmem:[%s159] sm:$0xff]
          %v200 = vld [vmem:[%s177] sm:$0xff]
          %201 = vadd.xlane.f32.xlu0 %v199
          %v202 = vpop.xlane.xlu0 %201
          %v203 = vadd.f32 %v200, %v202
          %204 = vst [vmem:[%s177] sm:$0xff] %v203
          %v205 = vld [vmem:[%s184] sm:$0xff]
          %v206 = vmul.f32 %v199, %v199
          %207 = vadd.xlane.f32.xlu0 %v206
          %v208 = vpop.xlane.xlu0 %207
          %v209 = vadd.f32 %v205, %v208
          %210 = vst [vmem:[%s184] sm:$0xff] %v209
        $region36: #{tpu_custom_call.1} parent=23 // pred_fallthru
          _
        %p211 = scmp.lt.s32.totalorder %s194, 128
        // Predicated region
        $region37: #{tpu_custom_call.1} parent=23 // pred_check
          %p212 = pneg %p211
        $region38: #{tpu_custom_call.1} parent=23 // pred_check_branch
          %214 = sbr.rel (%p212) target = $region40
        $region39: #{tpu_custom_call.1} parent=23 // pred_region
          %v215 = vlaneseq
          %v216 = vand.u32 %v215, 127
          %v217 = vstv %s194
          %vm218 = vcmp.lt.s32.totalorder %v216, %v217
          %v219 = vld [vmem:[%s159] sm:$0xff]
          %v220 = vsel %vm218, 1, 0
          %vm221 = vcmp.eq.s32.totalorder %v220, 1
          %v222 = vsel %vm221, %v219, 0.0
          %v223 = vld [vmem:[%s177] sm:$0xff]
          %224 = vadd.xlane.f32.xlu0 %v222
          %v225 = vpop.xlane.xlu0 %224
          %v226 = vadd.f32 %v223, %v225
          %227 = vst [vmem:[%s177] sm:$0xff] %v226
          %v228 = vld [vmem:[%s184] sm:$0xff]
          %v229 = vmul.f32 %v222, %v222
          %230 = vadd.xlane.f32.xlu0 %v229
          %v231 = vpop.xlane.xlu0 %230
          %v232 = vadd.f32 %v228, %v231
          %233 = vst [vmem:[%s184] sm:$0xff] %v232
        $region40: #{tpu_custom_call.1} parent=23 // pred_fallthru
          _
        %s234 = sand.u32 %s71, 1
        %s235 = scalar_lea.sflag [#allocation4], %s234
        %s236 = sand.u32 %s71, 1
        %s237 = smul.addr %s236, 8
        %s238 = scalar_lea.vmem [#allocation5], %s237
        %s239 = sand.u32 %s97, 1
        %s240 = scalar_lea.sflag [#allocation7], %s239
        %s241 = sand.u32 %s97, 1
        %s242 = smul.addr %s241, 8
        %s243 = scalar_lea.vmem [#allocation6], %s242
        // Predicated region
        $region41: #{tpu_custom_call.1} parent=23 // pred_check
          %p244 = pneg %p81
        $region42: #{tpu_custom_call.1} parent=23 // pred_check_branch
          %246 = sbr.rel (%p244) target = $region44
        $region43: #{tpu_custom_call.1} parent=23 // pred_region
          %s248 = ssub.s32 128, 128
          %249 = vsyncadd %s235, %s248
          %s250 = smul.addr %s27, 128
          %s251 = scalar_lea.hbm %s1, %s250
          %s253 = sshll.u32 %s238, 4
          %s254 = int_to_ptr.vmem [resolvable:$true] %s253
          %256 = dma.vmem_to_hbm [thread:$0]  %s254, 128, %s251, %s235
        $region44: #{tpu_custom_call.1} parent=23 // pred_fallthru
          _
        // Predicated region
        $region45: #{tpu_custom_call.1} parent=23 // pred_check
          %p257 = pneg %p107
        $region46: #{tpu_custom_call.1} parent=23 // pred_check_branch
          %259 = sbr.rel (%p257) target = $region48
        $region47: #{tpu_custom_call.1} parent=23 // pred_region
          %s261 = ssub.s32 128, 128
          %262 = vsyncadd %s240, %s261
          %s263 = smul.addr %s27, 128
          %s264 = scalar_lea.hbm %s2, %s263
          %s266 = sshll.u32 %s243, 4
          %s267 = int_to_ptr.vmem [resolvable:$true] %s266
          %269 = dma.vmem_to_hbm [thread:$0]  %s267, 128, %s264, %s240
        $region48: #{tpu_custom_call.1} parent=23 // pred_fallthru
          _
      $region24: #{tpu_custom_call.1} parent=5 // pred_fallthru
        _
      %p270 = scmp.le.s32.totalorder 2, %s18
      // Predicated region
      $region49: #{tpu_custom_call.1} parent=5 // pred_check
        %p271 = pneg %p270
      $region50: #{tpu_custom_call.1} parent=5 // pred_check_branch
        %273 = sbr.rel (%p271) target = $region52
      $region51: #{tpu_custom_call.1} parent=5 // pred_region
        %s274 = ssub.s32 %s18, 2
        // Predicated region
        $region53: #{tpu_custom_call.1} parent=51 // pred_check
          %p275 = pneg %p87
        $region54: #{tpu_custom_call.1} parent=51 // pred_check_branch
          %277 = sbr.rel (%p275) target = $region56
        $region55: #{tpu_custom_call.1} parent=51 // pred_region
          %s278 = sand.u32 %s72, 1
          %s279 = scalar_lea.sflag [#allocation4], %s278
          %s280 = sand.u32 %s72, 1
          %s281 = smul.addr %s280, 8
          %s282 = scalar_lea.vmem [#allocation5], %s281
          %283 = dma.done %s279, 128
        $region56: #{tpu_custom_call.1} parent=51 // pred_fallthru
          _
        // Predicated region
        $region57: #{tpu_custom_call.1} parent=51 // pred_check
          %p284 = pneg %p113
        $region58: #{tpu_custom_call.1} parent=51 // pred_check_branch
          %286 = sbr.rel (%p284) target = $region60
        $region59: #{tpu_custom_call.1} parent=51 // pred_region
          %s287 = sand.u32 %s98, 1
          %s288 = scalar_lea.sflag [#allocation7], %s287
          %s289 = sand.u32 %s98, 1
          %s290 = smul.addr %s289, 8
          %s291 = scalar_lea.vmem [#allocation6], %s290
          %292 = dma.done %s288, 128
        $region60: #{tpu_custom_call.1} parent=51 // pred_fallthru
          _
      $region52: #{tpu_custom_call.1} parent=5 // pred_fallthru
        _
    $region6: #{tpu_custom_call.1} parent=1 // loop_footer
      %s22 = sadd.s32 1, %s18
    $region7: #{tpu_custom_call.1} parent=1 // loop_footer_branch
      %17 = sbr.rel target = $region3
    $region8: #{tpu_custom_call.1} parent=1 // loop_exit
      _
    %293 = vsyncpa [#allocation3], 1
    %s294 = scalar_lea.sflag [#allocation3], 1
    %295 = vsyncpa %s294, 1
    %296 = vsyncpa [#allocation4], 1
    %s297 = scalar_lea.sflag [#allocation4], 1
    %298 = vsyncpa %s297, 1
    %299 = vsyncpa [#allocation7], 1
    %s300 = scalar_lea.sflag [#allocation7], 1
    %301 = vsyncpa %s300, 1

</llo_original>
